<compile_context>
chip_gen: v7x
topology: tpu7x:2x2x1
jax: 0.10.0
libtpu: 0.0.40
codegen_flags: <defaults>
</compile_context>

<pallas_src>
import jax
import jax.numpy as jnp
import numpy as np
from jax import lax
from jax.experimental import pallas as pl
from jax.experimental.pallas import tpu as pltpu

EPS = 1e-5
KSIZE = 3
VMEM_LIMIT_BYTES = 32 * 1024 * 1024   # safe on v5e/v6e (128 MiB) and v7x (64 MiB physical)

# Set to jnp.bfloat16 on v6e/v7x (accumulation stays f32). f32 here for a tight reference check.
MATMUL_DTYPE = jnp.float32


# --------- Phase 1: conv (3 accumulated MXU dots) + bias + BN partial sums (one pass) -------
def conv_stats_kernel(x_ref, w_ref, b_ref, y_ref, part_ref):
    # x_ref   : (1, Cin, L)     input tile, PyTorch layout (L on lanes)
    # w_ref   : (3, Cout, Cin)  tap-major weights
    # b_ref   : (Cout, 1)       bias
    # y_ref   : (1, Cout, L)    conv + bias output (pre-BN), possibly bf16
    # part_ref: (1, Cout, 2)    per-step per-channel [sum, sum-of-squares] (f32)
    x = x_ref[0].astype(MATMUL_DTYPE)                         # (Cin, L)
    cin, L = x.shape
    zero_col = jnp.zeros((cin, 1), dtype=x.dtype)
    # Three conv taps built in-register (no im2col in HBM); zero columns == the pad=1 halo.
    x_prev = jnp.concatenate([zero_col, x[:, :L - 1]], axis=1)   # x[:, l-1], 0 at l=0
    x_next = jnp.concatenate([x[:, 1:], zero_col], axis=1)       # x[:, l+1], 0 at l=L-1

    w0 = w_ref[0].astype(MATMUL_DTYPE)
    w1 = w_ref[1].astype(MATMUL_DTYPE)
    w2 = w_ref[2].astype(MATMUL_DTYPE)
    # Three accumulated dots into one f32 accumulator (cheap on v7x MRB; fine on v5e/v6e).
    y = jnp.dot(w0, x_prev, preferred_element_type=jnp.float32)
    y = y + jnp.dot(w1, x, preferred_element_type=jnp.float32)
    y = y + jnp.dot(w2, x_next, preferred_element_type=jnp.float32)
    y = y + b_ref[...]                                        # (Cout, L) + (Cout, 1)

    y_ref[0] = y.astype(y_ref.dtype)
    # BN partials computed on the f32 accumulator (before any bf16 cast of y).
    part_ref[0, :, 0:1] = jnp.sum(y, axis=1, keepdims=True)
    part_ref[0, :, 1:2] = jnp.sum(y * y, axis=1, keepdims=True)


# --------- Phase 2: normalize (fused scale/shift) + ReLU ------------------------------------
def bn_relu_kernel(y_ref, scale_ref, shift_ref, o_ref):
    z = y_ref[0].astype(jnp.float32) * scale_ref[...] + shift_ref[...]   # (Cout,1) lane-bcast
    o_ref[0] = jnp.maximum(z, 0.0).astype(o_ref.dtype)


def _down_forward(x, weight, bias, gamma, beta, *, y_dtype=jnp.float32):
    """x: (N, Cin, L) PyTorch layout. Returns (N, Cout, L), train-mode BN semantics."""
    N, Cin, L = x.shape
    Cout = weight.shape[0]
    out_dtype = x.dtype

    x = x.astype(MATMUL_DTYPE)                                           # no-op for f32
    w_kcc = jnp.transpose(weight, (2, 0, 1)).astype(MATMUL_DTYPE)        # (3, Cout, Cin), tiny
    b_c1 = bias.reshape(Cout, 1).astype(jnp.float32)

    cparams = pltpu.CompilerParams(
        dimension_semantics=("parallel",),          # no cross-step accumulator -> both v7x TCs
        vmem_limit_bytes=VMEM_LIMIT_BYTES,
    )

    y, partials = pl.pallas_call(
        conv_stats_kernel,
        out_shape=(
            jax.ShapeDtypeStruct((N, Cout, L), y_dtype),
            jax.ShapeDtypeStruct((N, Cout, 2), jnp.float32),
        ),
        grid_spec=pl.GridSpec(
            grid=(N,),
            in_specs=[
                pl.BlockSpec((1, Cin, L), lambda n: (n, 0, 0)),
                pl.BlockSpec((KSIZE, Cout, Cin), lambda n: (0, 0, 0)),
                pl.BlockSpec((Cout, 1), lambda n: (0, 0)),
            ],
            out_specs=(
                pl.BlockSpec((1, Cout, L), lambda n: (n, 0, 0)),
                pl.BlockSpec((1, Cout, 2), lambda n: (n, 0, 0)),
            ),
        ),
        compiler_params=cparams,
    )(x, w_kcc, b_c1)

    # --- tiny O(Cout) reduction: partials -> mean/var -> fused BN scale/shift ---------------
    sum_y = jnp.sum(partials[:, :, 0], axis=0)
    sumsq_y = jnp.sum(partials[:, :, 1], axis=0)
    count = jnp.float32(N * L)
    mean = sum_y / count
    var = jnp.maximum(sumsq_y / count - mean * mean, 0.0)                # biased batch variance
    scale = gamma.astype(jnp.float32) * lax.rsqrt(var + EPS)
    shift = beta.astype(jnp.float32) - mean * scale

    # Alias phase-2 output onto the y buffer when dtypes match (halves HBM footprint).
    aliases = {0: 0} if jnp.dtype(y_dtype) == jnp.dtype(out_dtype) else {}

    out = pl.pallas_call(
        bn_relu_kernel,
        out_shape=jax.ShapeDtypeStruct((N, Cout, L), out_dtype),
        grid_spec=pl.GridSpec(
            grid=(N,),
            in_specs=[
                pl.BlockSpec((1, Cout, L), lambda n: (n, 0, 0)),
                pl.BlockSpec((Cout, 1), lambda n: (0, 0)),
                pl.BlockSpec((Cout, 1), lambda n: (0, 0)),
            ],
            out_specs=pl.BlockSpec((1, Cout, L), lambda n: (n, 0, 0)),
        ),
        input_output_aliases=aliases,
        compiler_params=cparams,
    )(y, scale.reshape(Cout, 1), shift.reshape(Cout, 1))
    return out


down_forward = jax.jit(_down_forward, static_argnames=("y_dtype",))


def down_reference(x, weight, bias, gamma, beta):
    """Pure-JAX reference replicating PyTorch Down.forward (train-mode BN)."""
    N, Cin, L = x.shape
    x_nlc = jnp.transpose(x, (0, 2, 1)).astype(jnp.float32)
    x_pad = jnp.pad(x_nlc, ((0, 0), (1, 1), (0, 0)))
    y = jnp.zeros((N, L, weight.shape[0]), jnp.float32)
    for k in range(KSIZE):
        y = y + jnp.einsum("nli,io->nlo", x_pad[:, k:k + L, :], weight[:, :, k].T)
    y = y + bias[None, None, :]
    mean = jnp.mean(y, axis=(0, 1), keepdims=True)
    var = jnp.mean((y - mean) ** 2, axis=(0, 1), keepdims=True)
    z = (y - mean) / jnp.sqrt(var + EPS) * gamma[None, None, :] + beta[None, None, :]
    z = jnp.maximum(z, 0.0)
    return jnp.transpose(z, (0, 2, 1))


if __name__ == "__main__":
    key = jax.random.PRNGKey(0)

    def make_inputs(k, N, Cin, Cout, L):
        kx, kw, kb = jax.random.split(k, 3)
        x = jax.random.normal(kx, (N, Cin, L), dtype=jnp.float32)
        bound = 1.0 / np.sqrt(Cin * KSIZE)
        weight = jax.random.uniform(kw, (Cout, Cin, KSIZE), jnp.float32, -bound, bound)
        bias = jax.random.uniform(kb, (Cout,), jnp.float32, -bound, bound)
        gamma = jnp.ones((Cout,), jnp.float32)   # BatchNorm1d weight init
        beta = jnp.zeros((Cout,), jnp.float32)   # BatchNorm1d bias init
        return x, weight, bias, gamma, beta

    k1, k2 = jax.random.split(key)
    # (key, (N, Cin, Cout, L), y_dtype, rtol, atol)
    cases = [
        (k1, (2, 4, 8, 16), jnp.float32, 1e-4, 1e-5),    # primary small config (aliased path)
        (k2, (4, 4, 8, 201), jnp.float32, 1e-4, 1e-5),   # L not a lane multiple, N=4 grid
        (k1, (2, 4, 8, 16), jnp.bfloat16, 2e-2, 2e-2),   # bf16 y intermediate (BN stats stay f32)
    ]
    for cfg_key, (N, Cin, Cout, L), y_dtype, rtol, atol in cases:
        args = make_inputs(cfg_key, N, Cin, Cout, L)
        out = jax.block_until_ready(down_forward(*args, y_dtype=y_dtype))
        ref = down_reference(*args)
        np.testing.assert_allclose(np.asarray(out), np.asarray(ref), rtol=rtol, atol=atol)

    print("KERNEL_OK")
</pallas_src>

<mosaic_0001>
module attributes {stable_mosaic.version = 11 : i64} {
  func.func @conv_stats_kernel(%arg0: i32, %arg1: memref<1x4x16xf32, #tpu.memory_space<vmem>>, %arg2: memref<3x8x4xf32, #tpu.memory_space<vmem>>, %arg3: memref<8x1xf32, #tpu.memory_space<vmem>>, %arg4: memref<1x8x16xf32, #tpu.memory_space<vmem>>, %arg5: memref<1x8x2xf32, #tpu.memory_space<vmem>>) attributes {dimension_semantics = [#tpu.dimension_semantics<parallel>], iteration_bounds = array<i64: 2>, scalar_prefetch = 0 : i64, scratch_operands = 0 : i64, tpu.core_type = #tpu.core_type<tc>, window_params = [{transform_indices = @transform_0, window_bounds = array<i64: 1, 4, 16>}, {pipeline_mode = #tpu.pipeline_mode<synchronous>, transform_indices = @transform_1, window_bounds = array<i64: 3, 8, 4>}, {pipeline_mode = #tpu.pipeline_mode<synchronous>, transform_indices = @transform_2, window_bounds = array<i64: 8, 1>}, {transform_indices = @transform_3, window_bounds = array<i64: 1, 8, 16>}, {transform_indices = @transform_4, window_bounds = array<i64: 1, 8, 2>}]} {
    %c0 = arith.constant 0 : index
    %c0_0 = arith.constant 0 : index
    %c0_1 = arith.constant 0 : index
    %0 = vector.load %arg1[%c0, %c0_0, %c0_1] : memref<1x4x16xf32, #tpu.memory_space<vmem>>, vector<1x4x16xf32>
    %1 = vector.shape_cast %0 : vector<1x4x16xf32> to vector<4x16xf32>
    %cst = arith.constant 0.000000e+00 : f32
    %2 = vector.broadcast %cst : f32 to vector<4x1xf32>
    %3 = vector.extract_strided_slice %1 {offsets = [0, 0], sizes = [4, 15], strides = [1, 1]} : vector<4x16xf32> to vector<4x15xf32>
    %4 = tpu.concatenate %2, %3 in 1 : vector<4x1xf32>, vector<4x15xf32> -> vector<4x16xf32>
    %5 = vector.extract_strided_slice %1 {offsets = [0, 1], sizes = [4, 15], strides = [1, 1]} : vector<4x16xf32> to vector<4x15xf32>
    %6 = tpu.concatenate %5, %2 in 1 : vector<4x15xf32>, vector<4x1xf32> -> vector<4x16xf32>
    %c0_2 = arith.constant 0 : index
    %c0_3 = arith.constant 0 : index
    %c0_4 = arith.constant 0 : index
    %7 = vector.load %arg2[%c0_2, %c0_3, %c0_4] : memref<3x8x4xf32, #tpu.memory_space<vmem>>, vector<1x8x4xf32>
    %8 = vector.shape_cast %7 : vector<1x8x4xf32> to vector<8x4xf32>
    %c1 = arith.constant 1 : index
    %c0_5 = arith.constant 0 : index
    %c0_6 = arith.constant 0 : index
    %9 = vector.load %arg2[%c1, %c0_5, %c0_6] : memref<3x8x4xf32, #tpu.memory_space<vmem>>, vector<1x8x4xf32>
    %10 = vector.shape_cast %9 : vector<1x8x4xf32> to vector<8x4xf32>
    %c2 = arith.constant 2 : index
    %c0_7 = arith.constant 0 : index
    %c0_8 = arith.constant 0 : index
    %11 = vector.load %arg2[%c2, %c0_7, %c0_8] : memref<3x8x4xf32, #tpu.memory_space<vmem>>, vector<1x8x4xf32>
    %12 = vector.shape_cast %11 : vector<1x8x4xf32> to vector<8x4xf32>
    %cst_9 = arith.constant dense<0.000000e+00> : vector<8x16xf32>
    %13 = tpu.matmul %8, %4, %cst_9 {dimension_numbers = #tpu.dot_dimension_numbers<[1], [0], [0], [1], [0, 0, 1, 1], [], []>} : vector<8x4xf32>, vector<4x16xf32>, vector<8x16xf32> -> vector<8x16xf32>
    %cst_10 = arith.constant dense<0.000000e+00> : vector<8x16xf32>
    %14 = tpu.matmul %10, %1, %cst_10 {dimension_numbers = #tpu.dot_dimension_numbers<[1], [0], [0], [1], [0, 0, 1, 1], [], []>} : vector<8x4xf32>, vector<4x16xf32>, vector<8x16xf32> -> vector<8x16xf32>
    %15 = arith.addf %13, %14 : vector<8x16xf32>
    %cst_11 = arith.constant dense<0.000000e+00> : vector<8x16xf32>
    %16 = tpu.matmul %12, %6, %cst_11 {dimension_numbers = #tpu.dot_dimension_numbers<[1], [0], [0], [1], [0, 0, 1, 1], [], []>} : vector<8x4xf32>, vector<4x16xf32>, vector<8x16xf32> -> vector<8x16xf32>
    %17 = arith.addf %15, %16 : vector<8x16xf32>
    %c0_12 = arith.constant 0 : index
    %c0_13 = arith.constant 0 : index
    %18 = vector.load %arg3[%c0_12, %c0_13] : memref<8x1xf32, #tpu.memory_space<vmem>>, vector<8x1xf32>
    %19 = vector.broadcast %18 : vector<8x1xf32> to vector<8x16xf32>
    %20 = arith.addf %17, %19 : vector<8x16xf32>
    %c0_14 = arith.constant 0 : index
    %c0_15 = arith.constant 0 : index
    %c0_16 = arith.constant 0 : index
    %21 = vector.load %arg4[%c0_14, %c0_15, %c0_16] : memref<1x8x16xf32, #tpu.memory_space<vmem>>, vector<1x8x16xf32>
    %22 = vector.shape_cast %21 : vector<1x8x16xf32> to vector<8x16xf32>
    %23 = vector.shape_cast %20 : vector<8x16xf32> to vector<1x8x16xf32>
    tpu.vector_store %arg4[%c0_14, %c0_15, %c0_16], %23 {strides = array<i32>} : memref<1x8x16xf32, #tpu.memory_space<vmem>>, vector<1x8x16xf32>,
    %cst_17 = arith.constant dense<0.000000e+00> : vector<8xf32>
    %24 = vector.multi_reduction <add>, %20, %cst_17 [1] : vector<8x16xf32> to vector<8xf32>
    %25 = vector.shape_cast %24 : vector<8xf32> to vector<8x1xf32>
    %c0_18 = arith.constant 0 : index
    %c0_19 = arith.constant 0 : index
    %c0_20 = arith.constant 0 : index
    %26 = vector.load %arg5[%c0_18, %c0_19, %c0_20] : memref<1x8x2xf32, #tpu.memory_space<vmem>>, vector<1x8x1xf32>
    %27 = vector.shape_cast %26 : vector<1x8x1xf32> to vector<8x1xf32>
    %28 = vector.shape_cast %25 : vector<8x1xf32> to vector<1x8x1xf32>
    tpu.vector_store %arg5[%c0_18, %c0_19, %c0_20], %28 {strides = array<i32>} : memref<1x8x2xf32, #tpu.memory_space<vmem>>, vector<1x8x1xf32>,
    %29 = arith.mulf %20, %20 : vector<8x16xf32>
    %cst_21 = arith.constant dense<0.000000e+00> : vector<8xf32>
    %30 = vector.multi_reduction <add>, %29, %cst_21 [1] : vector<8x16xf32> to vector<8xf32>
    %31 = vector.shape_cast %30 : vector<8xf32> to vector<8x1xf32>
    %c0_22 = arith.constant 0 : index
    %c0_23 = arith.constant 0 : index
    %c1_24 = arith.constant 1 : index
    %32 = vector.load %arg5[%c0_22, %c0_23, %c1_24] : memref<1x8x2xf32, #tpu.memory_space<vmem>>, vector<1x8x1xf32>
    %33 = vector.shape_cast %32 : vector<1x8x1xf32> to vector<8x1xf32>
    %34 = vector.shape_cast %31 : vector<8x1xf32> to vector<1x8x1xf32>
    tpu.vector_store %arg5[%c0_22, %c0_23, %c1_24], %34 {strides = array<i32>} : memref<1x8x2xf32, #tpu.memory_space<vmem>>, vector<1x8x1xf32>,
    return
  }
  func.func @transform_0(%arg0: i32) -> (i32, i32, i32) {
    %c0_i32 = arith.constant 0 : i32
    %c0_i32_0 = arith.constant 0 : i32
    %c0_i32_1 = arith.constant 0 : i32
    return %arg0, %c0_i32, %c0_i32_0 : i32, i32, i32
  }
  func.func @transform_1(%arg0: i32) -> (i32, i32, i32) {
    %c0_i32 = arith.constant 0 : i32
    %c0_i32_0 = arith.constant 0 : i32
    %c0_i32_1 = arith.constant 0 : i32
    %c0_i32_2 = arith.constant 0 : i32
    return %c0_i32, %c0_i32_0, %c0_i32_1 : i32, i32, i32
  }
  func.func @transform_2(%arg0: i32) -> (i32, i32) {
    %c0_i32 = arith.constant 0 : i32
    %c0_i32_0 = arith.constant 0 : i32
    %c0_i32_1 = arith.constant 0 : i32
    return %c0_i32, %c0_i32_0 : i32, i32
  }
  func.func @transform_3(%arg0: i32) -> (i32, i32, i32) {
    %c0_i32 = arith.constant 0 : i32
    %c0_i32_0 = arith.constant 0 : i32
    %c0_i32_1 = arith.constant 0 : i32
    return %arg0, %c0_i32, %c0_i32_0 : i32, i32, i32
  }
  func.func @transform_4(%arg0: i32) -> (i32, i32, i32) {
    %c0_i32 = arith.constant 0 : i32
    %c0_i32_0 = arith.constant 0 : i32
    %c0_i32_1 = arith.constant 0 : i32
    return %arg0, %c0_i32, %c0_i32_0 : i32, i32, i32
  }
}

module attributes {stable_mosaic.version = 11 : i64} {
  func.func @bn_relu_kernel(%arg0: i32, %arg1: memref<1x8x16xf32, #tpu.memory_space<vmem>>, %arg2: memref<8x1xf32, #tpu.memory_space<vmem>>, %arg3: memref<8x1xf32, #tpu.memory_space<vmem>>, %arg4: memref<1x8x16xf32, #tpu.memory_space<vmem>>) attributes {dimension_semantics = [#tpu.dimension_semantics<parallel>], iteration_bounds = array<i64: 2>, scalar_prefetch = 0 : i64, scratch_operands = 0 : i64, tpu.core_type = #tpu.core_type<tc>, window_params = [{transform_indices = @transform_0, window_bounds = array<i64: 1, 8, 16>}, {pipeline_mode = #tpu.pipeline_mode<synchronous>, transform_indices = @transform_1, window_bounds = array<i64: 8, 1>}, {pipeline_mode = #tpu.pipeline_mode<synchronous>, transform_indices = @transform_2, window_bounds = array<i64: 8, 1>}, {transform_indices = @transform_3, window_bounds = array<i64: 1, 8, 16>}]} {
    %c0 = arith.constant 0 : index
    %c0_0 = arith.constant 0 : index
    %c0_1 = arith.constant 0 : index
    %0 = vector.load %arg1[%c0, %c0_0, %c0_1] : memref<1x8x16xf32, #tpu.memory_space<vmem>>, vector<1x8x16xf32>
    %1 = vector.shape_cast %0 : vector<1x8x16xf32> to vector<8x16xf32>
    %c0_2 = arith.constant 0 : index
    %c0_3 = arith.constant 0 : index
    %2 = vector.load %arg2[%c0_2, %c0_3] : memref<8x1xf32, #tpu.memory_space<vmem>>, vector<8x1xf32>
    %3 = vector.broadcast %2 : vector<8x1xf32> to vector<8x16xf32>
    %4 = arith.mulf %1, %3 : vector<8x16xf32>
    %c0_4 = arith.constant 0 : index
    %c0_5 = arith.constant 0 : index
    %5 = vector.load %arg3[%c0_4, %c0_5] : memref<8x1xf32, #tpu.memory_space<vmem>>, vector<8x1xf32>
    %6 = vector.broadcast %5 : vector<8x1xf32> to vector<8x16xf32>
    %7 = arith.addf %4, %6 : vector<8x16xf32>
    %cst = arith.constant 0.000000e+00 : f32
    %8 = vector.broadcast %cst : f32 to vector<8x16xf32>
    %9 = arith.maximumf %7, %8 : vector<8x16xf32>
    %c0_6 = arith.constant 0 : index
    %c0_7 = arith.constant 0 : index
    %c0_8 = arith.constant 0 : index
    %10 = vector.load %arg4[%c0_6, %c0_7, %c0_8] : memref<1x8x16xf32, #tpu.memory_space<vmem>>, vector<1x8x16xf32>
    %11 = vector.shape_cast %10 : vector<1x8x16xf32> to vector<8x16xf32>
    %12 = vector.shape_cast %9 : vector<8x16xf32> to vector<1x8x16xf32>
    tpu.vector_store %arg4[%c0_6, %c0_7, %c0_8], %12 {strides = array<i32>} : memref<1x8x16xf32, #tpu.memory_space<vmem>>, vector<1x8x16xf32>,
    return
  }
  func.func @transform_0(%arg0: i32) -> (i32, i32, i32) {
    %c0_i32 = arith.constant 0 : i32
    %c0_i32_0 = arith.constant 0 : i32
    %c0_i32_1 = arith.constant 0 : i32
    return %arg0, %c0_i32, %c0_i32_0 : i32, i32, i32
  }
  func.func @transform_1(%arg0: i32) -> (i32, i32) {
    %c0_i32 = arith.constant 0 : i32
    %c0_i32_0 = arith.constant 0 : i32
    %c0_i32_1 = arith.constant 0 : i32
    return %c0_i32, %c0_i32_0 : i32, i32
  }
  func.func @transform_2(%arg0: i32) -> (i32, i32) {
    %c0_i32 = arith.constant 0 : i32
    %c0_i32_0 = arith.constant 0 : i32
    %c0_i32_1 = arith.constant 0 : i32
    return %c0_i32, %c0_i32_0 : i32, i32
  }
  func.func @transform_3(%arg0: i32) -> (i32, i32, i32) {
    %c0_i32 = arith.constant 0 : i32
    %c0_i32_0 = arith.constant 0 : i32
    %c0_i32_1 = arith.constant 0 : i32
    return %arg0, %c0_i32, %c0_i32_0 : i32, i32, i32
  }
}

</mosaic_0001>

<llo_original>
// kernel: _down_forward.3
$region0: #{_down_forward.3}
  #allocation0 [shape = 'u32[]', space=smem, size = 0x4, offset = 0x4, fixed_abs, tag = 'smem constant byte address 0x4 - core index']
  #allocation1 [shape = 'u32[144,128]{1,0:T(1,128)}', space=vmem, size = 0x12000, scoped, tag = 'internal scratch']
  %s0 = inlined_call_operand.hbm [shape: f32[2,8,16], index: 0, kind: input, shape index: {}, may-alias: {0,3}]
  %s1 = inlined_call_operand.vmem [shape: f32[8,1], index: 1, kind: input, shape index: {}]
  %s2 = inlined_call_operand.vmem [shape: f32[8,1], index: 2, kind: input, shape index: {}]
  %s3 = inlined_call_operand.hbm [shape: f32[2,8,16], index: 3, kind: output, shape index: {}, may-alias: {0,3}]
  %s4 = sld [smem:[#allocation0]]
  $region49: #{_down_forward.3} parent=0
    _
  %s6 = ssub.s32 1, %s4
  %s7 = scalar_select 0, %s6, %s4
  $region1: #{_down_forward.3} parent=0
    #allocation2 [shape = 'u8[8192]{0}', space=vmem, size = 0x2000, scoped, tag = 'input window, operand 0']
    #allocation3 [shape = 's32[2]{0}', space=sflag, size = 0x8, scoped, tag = 'scoped memory for _down_forward.3']
    #allocation4 [shape = 's32[2]{0}', space=sflag, size = 0x8, scoped, tag = 'scoped memory for _down_forward.3']
    #allocation5 [shape = 'u8[8192]{0}', space=vmem, size = 0x2000, scoped, tag = 'output window, operand 0']
    %8 = vsyncpa [#allocation3], 0
    %s9 = scalar_lea.sflag [#allocation3], 1
    %10 = vsyncpa %s9, 0
    %11 = vsyncpa [#allocation4], 0
    %s12 = scalar_lea.sflag [#allocation4], 1
    %13 = vsyncpa %s12, 0
    loop: start=0, step=1, limit=4
    $region2: #{_down_forward.3} parent=1 // loop_pre_header
      _
    $region3: #{_down_forward.3} parent=1 // loop_header
      %s15 = sphi 0, %s19
      %p16 = scmp.ge.s32.totalorder %s15, 4
      %s25 = sphi 0, %s27
      %s28 = sphi 0, %s25
      %s29 = sphi 0, %s28
      %s45 = sphi 0, %s29
      %s49 = sphi 0, %s49
      %s51 = sphi 0, %s49
      %s52 = sphi 0, %s51
      %s66 = sphi 0, %s52
      %s70 = sphi 0, %s70
      %s72 = sphi 0, %s70
      %s73 = sphi 0, %s72
      %s87 = sphi 0, %s73
      %s93 = sphi 0, %s95
      %s96 = sphi 0, %s93
      %s97 = sphi 0, %s96
      %s113 = sphi 0, %s97
    $region4: #{_down_forward.3} parent=1 // loop_header_branch
      %18 = sbr.rel (%p16) target = $region8
    $region5: #{_down_forward.3} parent=1 // loop_body
      %s20 = ssub.s32 %s15, 1
      %s21 = ssub.s32 %s15, 2
      %s22 = sadd.s32 %s15, 1
      %s23 = ssub.s32 %s15, %s22
      %p24 = scmp.eq.s32.totalorder %s23, 0
      %s26 = sadd.s32 %s25, 1
      %s27 = scalar_select %p24, %s25, %s26
      %p30 = pneg %p24
      %p31 = scmp.eq.s32.totalorder %s15, 1
      %p32 = por %p30, %p31
      %p33 = scmp.ne.s32.totalorder %s25, %s28
      %p34 = scmp.eq.s32.totalorder %s15, 0
      %p35 = por %p33, %p34
      %p36 = scmp.ne.s32.totalorder %s25, %s28
      %p37 = scmp.eq.s32.totalorder %s20, 1
      %p38 = por %p36, %p37
      %p39 = scmp.ne.s32.totalorder %s28, %s29
      %p40 = scmp.eq.s32.totalorder %s20, 0
      %p41 = por %p39, %p40
      %p42 = scmp.ne.s32.totalorder %s28, %s29
      %p43 = scmp.eq.s32.totalorder %s21, 1
      %p44 = por %p42, %p43
      %p46 = scmp.ne.s32.totalorder %s29, %s45
      %p47 = scmp.eq.s32.totalorder %s21, 0
      %p48 = por %p46, %p47
      %s50 = sadd.s32 %s49, 1
      %p53 = scmp.eq.s32.totalorder %s15, 1
      %p54 = scmp.ne.s32.totalorder %s49, %s51
      %p55 = scmp.eq.s32.totalorder %s15, 0
      %p56 = por %p54, %p55
      %p57 = scmp.ne.s32.totalorder %s49, %s51
      %p58 = scmp.eq.s32.totalorder %s20, 1
      %p59 = por %p57, %p58
      %p60 = scmp.ne.s32.totalorder %s51, %s52
      %p61 = scmp.eq.s32.totalorder %s20, 0
      %p62 = por %p60, %p61
      %p63 = scmp.ne.s32.totalorder %s51, %s52
      %p64 = scmp.eq.s32.totalorder %s21, 1
      %p65 = por %p63, %p64
      %p67 = scmp.ne.s32.totalorder %s52, %s66
      %p68 = scmp.eq.s32.totalorder %s21, 0
      %p69 = por %p67, %p68
      %s71 = sadd.s32 %s70, 1
      %p74 = scmp.eq.s32.totalorder %s15, 1
      %p75 = scmp.ne.s32.totalorder %s70, %s72
      %p76 = scmp.eq.s32.totalorder %s15, 0
      %p77 = por %p75, %p76
      %p78 = scmp.ne.s32.totalorder %s70, %s72
      %p79 = scmp.eq.s32.totalorder %s20, 1
      %p80 = por %p78, %p79
      %p81 = scmp.ne.s32.totalorder %s72, %s73
      %p82 = scmp.eq.s32.totalorder %s20, 0
      %p83 = por %p81, %p82
      %p84 = scmp.ne.s32.totalorder %s72, %s73
      %p85 = scmp.eq.s32.totalorder %s21, 1
      %p86 = por %p84, %p85
      %p88 = scmp.ne.s32.totalorder %s73, %s87
      %p89 = scmp.eq.s32.totalorder %s21, 0
      %p90 = por %p88, %p89
      %s91 = ssub.s32 %s15, %s22
      %p92 = scmp.eq.s32.totalorder %s91, 0
      %s94 = sadd.s32 %s93, 1
      %s95 = scalar_select %p92, %s93, %s94
      %p98 = pneg %p92
      %p99 = scmp.eq.s32.totalorder %s15, 1
      %p100 = por %p98, %p99
      %p101 = scmp.ne.s32.totalorder %s93, %s96
      %p102 = scmp.eq.s32.totalorder %s15, 0
      %p103 = por %p101, %p102
      %p104 = scmp.ne.s32.totalorder %s93, %s96
      %p105 = scmp.eq.s32.totalorder %s20, 1
      %p106 = por %p104, %p105
      %p107 = scmp.ne.s32.totalorder %s96, %s97
      %p108 = scmp.eq.s32.totalorder %s20, 0
      %p109 = por %p107, %p108
      %p110 = scmp.ne.s32.totalorder %s96, %s97
      %p111 = scmp.eq.s32.totalorder %s21, 1
      %p112 = por %p110, %p111
      %p114 = scmp.ne.s32.totalorder %s97, %s113
      %p115 = scmp.eq.s32.totalorder %s21, 0
      %p116 = por %p114, %p115
      %p117 = scmp.le.s32.totalorder 1, %s15
      %p118 = scmp.lt.s32.totalorder %s15, 3
      %p119 = pnand %p117, %p118
      %p120 = pneg %p119
      // Predicated region
      $region9: #{_down_forward.3} parent=5 // pred_check
        _
      $region10: #{_down_forward.3} parent=5 // pred_check_branch
        %122 = sbr.rel (%p119) target = $region12
      $region11: #{_down_forward.3} parent=5 // pred_region
        %s123 = ssub.s32 %s15, 1
        // Predicated region
        $region13: #{_down_forward.3} parent=11 // pred_check
          %p124 = pneg %p62
        $region14: #{_down_forward.3} parent=11 // pred_check_branch
          %126 = sbr.rel (%p124) target = $region16
        $region15: #{_down_forward.3} parent=11 // pred_region
          _
        $region16: #{_down_forward.3} parent=11 // pred_fallthru
          _
        // Predicated region
        $region17: #{_down_forward.3} parent=11 // pred_check
          %p127 = pneg %p83
        $region18: #{_down_forward.3} parent=11 // pred_check_branch
          %129 = sbr.rel (%p127) target = $region20
        $region19: #{_down_forward.3} parent=11 // pred_region
          _
        $region20: #{_down_forward.3} parent=11 // pred_fallthru
          _
      $region12: #{_down_forward.3} parent=5 // pred_fallthru
        _
      %p130 = scmp.lt.s32.totalorder %s15, 2
      // Predicated region
      $region21: #{_down_forward.3} parent=5 // pred_check
        %p131 = pneg %p130
      $region22: #{_down_forward.3} parent=5 // pred_check_branch
        %133 = sbr.rel (%p131) target = $region24
      $region23: #{_down_forward.3} parent=5 // pred_region
        // Predicated region
        $region25: #{_down_forward.3} parent=23 // pred_check
          %p134 = pneg %p35
        $region26: #{_down_forward.3} parent=23 // pred_check_branch
          %136 = sbr.rel (%p134) target = $region28
        $region27: #{_down_forward.3} parent=23 // pred_region
          %s137 = sand.u32 %s25, 1
          %s138 = scalar_lea.sflag [#allocation3], %s137
          %s139 = sand.u32 %s25, 1
          %s140 = smul.addr %s139, 8
          %s141 = scalar_lea.vmem [#allocation2], %s140
          %s143 = ssub.s32 128, 128
          %144 = vsyncadd %s138, %s143
          %s145 = smul.addr %s15, 128
          %s146 = scalar_lea.hbm %s0, %s145
          %s148 = sshll.u32 %s141, 4
          %s149 = int_to_ptr.vmem [resolvable:$true] %s148
          %151 = dma.hbm_to_vmem [thread:$0]  %s146, 128, %s149, %s138
        $region28: #{_down_forward.3} parent=23 // pred_fallthru
          _
      $region24: #{_down_forward.3} parent=5 // pred_fallthru
        _
      %p152 = scmp.le.s32.totalorder 1, %s15
      %p153 = scmp.lt.s32.totalorder %s15, 3
      %p154 = pnand %p152, %p153
      %p155 = pneg %p154
      // Predicated region
      $region29: #{_down_forward.3} parent=5 // pred_check
        _
      $region30: #{_down_forward.3} parent=5 // pred_check_branch
        %157 = sbr.rel (%p154) target = $region32
      $region31: #{_down_forward.3} parent=5 // pred_region
        %s158 = ssub.s32 %s15, 1
        %s159 = sand.u32 %s28, 1
        %s160 = scalar_lea.sflag [#allocation3], %s159
        %s161 = sand.u32 %s28, 1
        %s162 = smul.addr %s161, 8
        %s163 = scalar_lea.vmem [#allocation2], %s162
        // Predicated region
        $region33: #{_down_forward.3} parent=31 // pred_check
          %p164 = pneg %p41
        $region34: #{_down_forward.3} parent=31 // pred_check_branch
          %166 = sbr.rel (%p164) target = $region36
        $region35: #{_down_forward.3} parent=31 // pred_region
          %167 = dma.done %s160, 128
        $region36: #{_down_forward.3} parent=31 // pred_fallthru
          _
        %s168 = sand.u32 %s28, 1
        %s169 = scalar_lea.sflag [#allocation3], %s168
        %s170 = sand.u32 %s28, 1
        %s171 = smul.addr %s170, 8
        %s172 = scalar_lea.vmem [#allocation2], %s171
        %p173 = pneg %p41
        %p174 = pneg %p38
        %p175 = pneg %p62
        %p176 = pneg %p59
        %p177 = pneg %p83
        %p178 = pneg %p80
        %p179 = pneg %p109
        %p180 = pneg %p106
        %s181 = sand.u32 %s96, 1
        %s182 = scalar_lea.sflag [#allocation4], %s181
        %s183 = sand.u32 %s96, 1
        %s184 = smul.addr %s183, 8
        %s185 = scalar_lea.vmem [#allocation5], %s184
        %v186 = vld [vmem:[%s163] sm:$0xff]
        %v187 = vld [vmem:[%s1] sm:$0xff]
        %189 = vset.pattern.permute.xlu0 0
        %190 = vperm.xlu0 %189, %v187
        %v191 = vpop.permute.xlu0 %190
        %v193 = vmul.f32 %v186, %v191
        %v194 = vld [vmem:[%s2] sm:$0xff]
        %196 = vset.pattern.permute.xlu0 0
        %197 = vperm.xlu0 %196, %v194
        %v198 = vpop.permute.xlu0 %197
        %v200 = vadd.f32 %v193, %v198
        %v201 = vmax.f32 %v200, 0.0
        %vm202 = vcmask 130048
        %203 = vst.msk [vmem:[%s185] sm:$0xff] %vm202, %v201
        %s204 = sand.u32 %s96, 1
        %s205 = scalar_lea.sflag [#allocation4], %s204
        %s206 = sand.u32 %s96, 1
        %s207 = smul.addr %s206, 8
        %s208 = scalar_lea.vmem [#allocation5], %s207
        // Predicated region
        $region37: #{_down_forward.3} parent=31 // pred_check
          %p209 = pneg %p106
        $region38: #{_down_forward.3} parent=31 // pred_check_branch
          %211 = sbr.rel (%p209) target = $region40
        $region39: #{_down_forward.3} parent=31 // pred_region
          %s213 = ssub.s32 128, 128
          %214 = vsyncadd %s205, %s213
          %s215 = smul.addr %s20, 128
          %s216 = scalar_lea.hbm %s3, %s215
          %s218 = sshll.u32 %s208, 4
          %s219 = int_to_ptr.vmem [resolvable:$true] %s218
          %221 = dma.vmem_to_hbm [thread:$0]  %s219, 128, %s216, %s205
        $region40: #{_down_forward.3} parent=31 // pred_fallthru
          _
      $region32: #{_down_forward.3} parent=5 // pred_fallthru
        _
      %p222 = scmp.le.s32.totalorder 2, %s15
      // Predicated region
      $region41: #{_down_forward.3} parent=5 // pred_check
        %p223 = pneg %p222
      $region42: #{_down_forward.3} parent=5 // pred_check_branch
        %225 = sbr.rel (%p223) target = $region44
      $region43: #{_down_forward.3} parent=5 // pred_region
        %s226 = ssub.s32 %s15, 2
        // Predicated region
        $region45: #{_down_forward.3} parent=43 // pred_check
          %p227 = pneg %p112
        $region46: #{_down_forward.3} parent=43 // pred_check_branch
          %229 = sbr.rel (%p227) target = $region48
        $region47: #{_down_forward.3} parent=43 // pred_region
          %s230 = sand.u32 %s97, 1
          %s231 = scalar_lea.sflag [#allocation4], %s230
          %s232 = sand.u32 %s97, 1
          %s233 = smul.addr %s232, 8
          %s234 = scalar_lea.vmem [#allocation5], %s233
          %235 = dma.done %s231, 128
        $region48: #{_down_forward.3} parent=43 // pred_fallthru
          _
      $region44: #{_down_forward.3} parent=5 // pred_fallthru
        _
    $region6: #{_down_forward.3} parent=1 // loop_footer
      %s19 = sadd.s32 1, %s15
    $region7: #{_down_forward.3} parent=1 // loop_footer_branch
      %14 = sbr.rel target = $region3
    $region8: #{_down_forward.3} parent=1 // loop_exit
      _
    %236 = vsyncpa [#allocation3], 1
    %s237 = scalar_lea.sflag [#allocation3], 1
    %238 = vsyncpa %s237, 1
    %239 = vsyncpa [#allocation4], 1
    %s240 = scalar_lea.sflag [#allocation4], 1
    %241 = vsyncpa %s240, 1

// kernel: _down_forward.2
$region0: #{_down_forward.2}
  #allocation0 [shape = 'u32[]', space=smem, size = 0x4, offset = 0x4, fixed_abs, tag = 'smem constant byte address 0x4 - core index']
  #allocation1 [shape = 'u32[144,128]{1,0:T(1,128)}', space=vmem, size = 0x12000, scoped, tag = 'internal scratch']
  %s0 = inlined_call_operand.vmem [shape: f32[2,4,16], index: 0, kind: input, shape index: {}]
  %s1 = inlined_call_operand.vmem [shape: f32[3,8,4], index: 1, kind: input, shape index: {}]
  %s2 = inlined_call_operand.vmem [shape: f32[8,1], index: 2, kind: input, shape index: {}]
  %s3 = inlined_call_operand.hbm [shape: f32[2,8,16], index: 3, kind: output, shape index: {0}]
  %s4 = inlined_call_operand.vmem [shape: f32[2,8,2], index: 4, kind: output, shape index: {1}]
  %5 = xla_tuple %s3, %s4
  %s6 = sld [smem:[#allocation0]]
  $region53: #{_down_forward.2} parent=0
    _
  %s8 = ssub.s32 1, %s6
  %s9 = scalar_select 0, %s8, %s6
  $region1: #{_down_forward.2} parent=0
    #allocation2 [shape = 'u8[8192]{0}', space=vmem, size = 0x2000, scoped, tag = 'output window, operand 0']
    #allocation3 [shape = 's32[2]{0}', space=sflag, size = 0x8, scoped, tag = 'scoped memory for _down_forward.2']
    %10 = vsyncpa [#allocation3], 0
    %s11 = scalar_lea.sflag [#allocation3], 1
    %12 = vsyncpa %s11, 0
    loop: start=0, step=1, limit=4
    $region2: #{_down_forward.2} parent=1 // loop_pre_header
      _
    $region3: #{_down_forward.2} parent=1 // loop_header
      %s14 = sphi 0, %s18
      %p15 = scmp.ge.s32.totalorder %s14, 4
      %s24 = sphi 0, %s26
      %s27 = sphi 0, %s24
      %s28 = sphi 0, %s27
      %s44 = sphi 0, %s28
      %s48 = sphi 0, %s48
      %s50 = sphi 0, %s48
      %s51 = sphi 0, %s50
      %s65 = sphi 0, %s51
      %s69 = sphi 0, %s69
      %s71 = sphi 0, %s69
      %s72 = sphi 0, %s71
      %s86 = sphi 0, %s72
      %s92 = sphi 0, %s94
      %s95 = sphi 0, %s92
      %s96 = sphi 0, %s95
      %s112 = sphi 0, %s96
      %s118 = sphi 0, %s120
      %s121 = sphi 0, %s118
      %s122 = sphi 0, %s121
      %s138 = sphi 0, %s122
    $region4: #{_down_forward.2} parent=1 // loop_header_branch
      %17 = sbr.rel (%p15) target = $region8
    $region5: #{_down_forward.2} parent=1 // loop_body
      %s19 = ssub.s32 %s14, 1
      %s20 = ssub.s32 %s14, 2
      %s21 = sadd.s32 %s14, 1
      %s22 = ssub.s32 %s14, %s21
      %p23 = scmp.eq.s32.totalorder %s22, 0
      %s25 = sadd.s32 %s24, 1
      %s26 = scalar_select %p23, %s24, %s25
      %p29 = pneg %p23
      %p30 = scmp.eq.s32.totalorder %s14, 1
      %p31 = por %p29, %p30
      %p32 = scmp.ne.s32.totalorder %s24, %s27
      %p33 = scmp.eq.s32.totalorder %s14, 0
      %p34 = por %p32, %p33
      %p35 = scmp.ne.s32.totalorder %s24, %s27
      %p36 = scmp.eq.s32.totalorder %s19, 1
      %p37 = por %p35, %p36
      %p38 = scmp.ne.s32.totalorder %s27, %s28
      %p39 = scmp.eq.s32.totalorder %s19, 0
      %p40 = por %p38, %p39
      %p41 = scmp.ne.s32.totalorder %s27, %s28
      %p42 = scmp.eq.s32.totalorder %s20, 1
      %p43 = por %p41, %p42
      %p45 = scmp.ne.s32.totalorder %s28, %s44
      %p46 = scmp.eq.s32.totalorder %s20, 0
      %p47 = por %p45, %p46
      %s49 = sadd.s32 %s48, 1
      %p52 = scmp.eq.s32.totalorder %s14, 1
      %p53 = scmp.ne.s32.totalorder %s48, %s50
      %p54 = scmp.eq.s32.totalorder %s14, 0
      %p55 = por %p53, %p54
      %p56 = scmp.ne.s32.totalorder %s48, %s50
      %p57 = scmp.eq.s32.totalorder %s19, 1
      %p58 = por %p56, %p57
      %p59 = scmp.ne.s32.totalorder %s50, %s51
      %p60 = scmp.eq.s32.totalorder %s19, 0
      %p61 = por %p59, %p60
      %p62 = scmp.ne.s32.totalorder %s50, %s51
      %p63 = scmp.eq.s32.totalorder %s20, 1
      %p64 = por %p62, %p63
      %p66 = scmp.ne.s32.totalorder %s51, %s65
      %p67 = scmp.eq.s32.totalorder %s20, 0
      %p68 = por %p66, %p67
      %s70 = sadd.s32 %s69, 1
      %p73 = scmp.eq.s32.totalorder %s14, 1
      %p74 = scmp.ne.s32.totalorder %s69, %s71
      %p75 = scmp.eq.s32.totalorder %s14, 0
      %p76 = por %p74, %p75
      %p77 = scmp.ne.s32.totalorder %s69, %s71
      %p78 = scmp.eq.s32.totalorder %s19, 1
      %p79 = por %p77, %p78
      %p80 = scmp.ne.s32.totalorder %s71, %s72
      %p81 = scmp.eq.s32.totalorder %s19, 0
      %p82 = por %p80, %p81
      %p83 = scmp.ne.s32.totalorder %s71, %s72
      %p84 = scmp.eq.s32.totalorder %s20, 1
      %p85 = por %p83, %p84
      %p87 = scmp.ne.s32.totalorder %s72, %s86
      %p88 = scmp.eq.s32.totalorder %s20, 0
      %p89 = por %p87, %p88
      %s90 = ssub.s32 %s14, %s21
      %p91 = scmp.eq.s32.totalorder %s90, 0
      %s93 = sadd.s32 %s92, 1
      %s94 = scalar_select %p91, %s92, %s93
      %p97 = pneg %p91
      %p98 = scmp.eq.s32.totalorder %s14, 1
      %p99 = por %p97, %p98
      %p100 = scmp.ne.s32.totalorder %s92, %s95
      %p101 = scmp.eq.s32.totalorder %s14, 0
      %p102 = por %p100, %p101
      %p103 = scmp.ne.s32.totalorder %s92, %s95
      %p104 = scmp.eq.s32.totalorder %s19, 1
      %p105 = por %p103, %p104
      %p106 = scmp.ne.s32.totalorder %s95, %s96
      %p107 = scmp.eq.s32.totalorder %s19, 0
      %p108 = por %p106, %p107
      %p109 = scmp.ne.s32.totalorder %s95, %s96
      %p110 = scmp.eq.s32.totalorder %s20, 1
      %p111 = por %p109, %p110
      %p113 = scmp.ne.s32.totalorder %s96, %s112
      %p114 = scmp.eq.s32.totalorder %s20, 0
      %p115 = por %p113, %p114
      %s116 = ssub.s32 %s14, %s21
      %p117 = scmp.eq.s32.totalorder %s116, 0
      %s119 = sadd.s32 %s118, 1
      %s120 = scalar_select %p117, %s118, %s119
      %p123 = pneg %p117
      %p124 = scmp.eq.s32.totalorder %s14, 1
      %p125 = por %p123, %p124
      %p126 = scmp.ne.s32.totalorder %s118, %s121
      %p127 = scmp.eq.s32.totalorder %s14, 0
      %p128 = por %p126, %p127
      %p129 = scmp.ne.s32.totalorder %s118, %s121
      %p130 = scmp.eq.s32.totalorder %s19, 1
      %p131 = por %p129, %p130
      %p132 = scmp.ne.s32.totalorder %s121, %s122
      %p133 = scmp.eq.s32.totalorder %s19, 0
      %p134 = por %p132, %p133
      %p135 = scmp.ne.s32.totalorder %s121, %s122
      %p136 = scmp.eq.s32.totalorder %s20, 1
      %p137 = por %p135, %p136
      %p139 = scmp.ne.s32.totalorder %s122, %s138
      %p140 = scmp.eq.s32.totalorder %s20, 0
      %p141 = por %p139, %p140
      %p142 = scmp.le.s32.totalorder 1, %s14
      %p143 = scmp.lt.s32.totalorder %s14, 3
      %p144 = pnand %p142, %p143
      %p145 = pneg %p144
      // Predicated region
      $region9: #{_down_forward.2} parent=5 // pred_check
        _
      $region10: #{_down_forward.2} parent=5 // pred_check_branch
        %147 = sbr.rel (%p144) target = $region12
      $region11: #{_down_forward.2} parent=5 // pred_region
        %s148 = ssub.s32 %s14, 1
        // Predicated region
        $region13: #{_down_forward.2} parent=11 // pred_check
          %p149 = pneg %p61
        $region14: #{_down_forward.2} parent=11 // pred_check_branch
          %151 = sbr.rel (%p149) target = $region16
        $region15: #{_down_forward.2} parent=11 // pred_region
          _
        $region16: #{_down_forward.2} parent=11 // pred_fallthru
          _
        // Predicated region
        $region17: #{_down_forward.2} parent=11 // pred_check
          %p152 = pneg %p82
        $region18: #{_down_forward.2} parent=11 // pred_check_branch
          %154 = sbr.rel (%p152) target = $region20
        $region19: #{_down_forward.2} parent=11 // pred_region
          _
        $region20: #{_down_forward.2} parent=11 // pred_fallthru
          _
      $region12: #{_down_forward.2} parent=5 // pred_fallthru
        _
      %p155 = scmp.lt.s32.totalorder %s14, 2
      // Predicated region
      $region21: #{_down_forward.2} parent=5 // pred_check
        %p156 = pneg %p155
      $region22: #{_down_forward.2} parent=5 // pred_check_branch
        %158 = sbr.rel (%p156) target = $region24
      $region23: #{_down_forward.2} parent=5 // pred_region
        // Predicated region
        $region25: #{_down_forward.2} parent=23 // pred_check
          %p159 = pneg %p34
        $region26: #{_down_forward.2} parent=23 // pred_check_branch
          %161 = sbr.rel (%p159) target = $region28
        $region27: #{_down_forward.2} parent=23 // pred_region
          %p162 = scmp.lt.s32.totalorder %s14, 1
          %s163 = scalar_select %p162, %s14, 1
          %s164 = smul.addr %s163, 4
          %s165 = scalar_lea.vmem %s0, %s164
        $region28: #{_down_forward.2} parent=23 // pred_fallthru
          _
      $region24: #{_down_forward.2} parent=5 // pred_fallthru
        _
      %p166 = scmp.le.s32.totalorder 1, %s14
      %p167 = scmp.lt.s32.totalorder %s14, 3
      %p168 = pnand %p166, %p167
      %p169 = pneg %p168
      // Predicated region
      $region29: #{_down_forward.2} parent=5 // pred_check
        _
      $region30: #{_down_forward.2} parent=5 // pred_check_branch
        %171 = sbr.rel (%p168) target = $region32
      $region31: #{_down_forward.2} parent=5 // pred_region
        %s172 = ssub.s32 %s14, 1
        %p173 = scmp.lt.s32.totalorder %s19, 1
        %s174 = scalar_select %p173, %s19, 1
        %s175 = smul.addr %s174, 4
        %s176 = scalar_lea.vmem %s0, %s175
        %p177 = pneg %p40
        %p178 = pneg %p37
        %p179 = pneg %p61
        %p180 = pneg %p58
        %p181 = pneg %p82
        %p182 = pneg %p79
        %p183 = pneg %p108
        %p184 = pneg %p105
        %s185 = sand.u32 %s95, 1
        %s186 = scalar_lea.sflag [#allocation3], %s185
        %s187 = sand.u32 %s95, 1
        %s188 = smul.addr %s187, 8
        %s189 = scalar_lea.vmem [#allocation2], %s188
        %p190 = pneg %p134
        %p191 = pneg %p131
        %p192 = scmp.lt.s32.totalorder %s19, 1
        %s193 = scalar_select %p192, %s19, 1
        %s194 = smul.addr %s193, 8
        %s195 = scalar_lea.vmem %s4, %s194
        %p196 = scmp.lt.s32.totalorder %s19, 1
        %s197 = scalar_select %p196, %s19, 1
        %s198 = smul.addr %s197, 4
        %s199 = scalar_lea.vmem %s0, %s198
        %p200 = scmp.lt.s32.totalorder %s19, 1
        %s201 = scalar_select %p200, %s19, 1
        %s202 = smul.addr %s201, 8
        %s203 = scalar_lea.vmem %s4, %s202
        %v204 = vld [vmem:[%s199] sm:$0xf]
        %206 = vrot.lane.b32.xlu0 %v204, 1
        %v207 = vpop.permute.xlu0 %206
        %vm209 = vcmask 7168
        %v210 = vsel %vm209, 0.0, %v207
        %211 = vrot.lane.b32.xlu0 %v204, 127
        %v212 = vpop.permute.xlu0 %211
        %vm214 = vcmask 121856
        %v215 = vsel %vm214, %v212, 0.0
        %v216 = vld [vmem:[%s1] sm:$0xff]
        %s217 = scalar_lea.vmem %s1, 8
        %v218 = vld [vmem:[%s217] sm:$0xff]
        %s219 = scalar_lea.vmem %s1, 16
        %v220 = vld [vmem:[%s219] sm:$0xff]
        %vm221 = vcmask 31744
        %v223 = vsel %vm221, %v218, 0
        %vm225 = vcmask 1043456
        %v226 = vsel %vm225, %v204, 0
        %228 = vmatprep.subr.mxu0 0.0
        %229 = vmatpush1.msra.mxu0 %v226
        %230 = vmatprep.subr.mxu0 0.0
        %231 = vmatpush1.msra.mxu0 0.0
        %232 = vmatprep.subr.mxu0 0.0
        %233 = vmatpush1.msra.mxu0 0.0
        %234 = vmatprep.subr.mxu0 0.0
        %235 = vmatpush1.msra.mxu0 0.0
        %236 = vmatprep.subr.mxu0 0.0
        %237 = vmatpush1.msra.mxu0 0.0
        %238 = vmatprep.subr.mxu0 0.0
        %239 = vmatpush1.msra.mxu0 0.0
        %240 = vmatprep.subr.mxu0 0.0
        %241 = vmatpush1.msra.mxu0 0.0
        %242 = vmatprep.subr.mxu0 0.0
        %243 = vmatpush1.msra.mxu0 0.0
        %244 = vmatprep.subr.mxu0 0.0
        %245 = vmatpush1.msra.mxu0 0.0
        %246 = vmatprep.subr.mxu0 0.0
        %247 = vmatpush1.msra.mxu0 0.0
        %248 = vmatprep.subr.mxu0 0.0
        %249 = vmatpush1.msra.mxu0 0.0
        %250 = vmatprep.subr.mxu0 0.0
        %251 = vmatpush1.msra.mxu0 0.0
        %252 = vmatprep.subr.mxu0 0.0
        %253 = vmatpush1.msra.mxu0 0.0
        %254 = vmatprep.subr.mxu0 0.0
        %255 = vmatpush1.msra.mxu0 0.0
        %256 = vmatprep.subr.mxu0 0.0
        %257 = vmatpush1.msra.mxu0 0.0
        %258 = vmatprep.subr.mxu0 0.0
        %259 = vmatpush1.msra.mxu0 0.0
        %260 = vmatprep.subr.mxu0 0.0
        %261 = vmatpush1.msra.mxu0 0.0
        %262 = vmatprep.subr.mxu0 0.0
        %263 = vmatpush1.msra.mxu0 0.0
        %264 = vmatprep.subr.mxu0 0.0
        %265 = vmatpush1.msra.mxu0 0.0
        %266 = vmatprep.subr.mxu0 0.0
        %267 = vmatpush1.msra.mxu0 0.0
        %268 = vmatprep.subr.mxu0 0.0
        %269 = vmatpush1.msra.mxu0 0.0
        %270 = vmatprep.subr.mxu0 0.0
        %271 = vmatpush1.msra.mxu0 0.0
        %272 = vmatprep.subr.mxu0 0.0
        %273 = vmatpush1.msra.mxu0 0.0
        %274 = vmatprep.subr.mxu0 0.0
        %275 = vmatpush1.msra.mxu0 0.0
        %276 = vmatprep.subr.mxu0 0.0
        %277 = vmatpush1.msra.mxu0 0.0
        %278 = vmatprep.subr.mxu0 0.0
        %279 = vmatpush1.msra.mxu0 0.0
        %280 = vmatprep.subr.mxu0 0.0
        %281 = vmatpush1.msra.mxu0 0.0
        %282 = vmatprep.subr.mxu0 0.0
        %283 = vmatpush1.msra.mxu0 0.0
        %284 = vmatprep.subr.mxu0 0.0
        %285 = vmatpush1.msra.mxu0 0.0
        %286 = vmatprep.subr.mxu0 0.0
        %287 = vmatpush1.msra.mxu0 0.0
        %288 = vmatprep.subr.mxu0 0.0
        %289 = vmatpush1.msra.mxu0 0.0
        %290 = vmatprep.subr.mxu0 0.0
        %291 = vmatpush1.msra.mxu0 0.0
        %292 = vmatprep.mubr.f32.mxu0 0.0
        %293 = vmatmul.mubr.f32.gmra.mrb[0].mxu0 %v223
        %v294 = vpop.f32.mrb[0].mxu0
        %v295 = vadd.f32 0.0, %v294
        %v296 = vpop.f32.mrb[0].mxu0
        %297 = vdwg.mxu0
        %v299 = vsel %vm221, %v216, 0
        %v302 = vsel %vm225, %v210, 0
        %304 = vmatprep.subr.mxu0 0.0
        %305 = vmatpush1.msra.mxu0 %v302
        %306 = vmatprep.subr.mxu0 0.0
        %307 = vmatpush1.msra.mxu0 0.0
        %308 = vmatprep.subr.mxu0 0.0
        %309 = vmatpush1.msra.mxu0 0.0
        %310 = vmatprep.subr.mxu0 0.0
        %311 = vmatpush1.msra.mxu0 0.0
        %312 = vmatprep.subr.mxu0 0.0
        %313 = vmatpush1.msra.mxu0 0.0
        %314 = vmatprep.subr.mxu0 0.0
        %315 = vmatpush1.msra.mxu0 0.0
        %316 = vmatprep.subr.mxu0 0.0
        %317 = vmatpush1.msra.mxu0 0.0
        %318 = vmatprep.subr.mxu0 0.0
        %319 = vmatpush1.msra.mxu0 0.0
        %320 = vmatprep.subr.mxu0 0.0
        %321 = vmatpush1.msra.mxu0 0.0
        %322 = vmatprep.subr.mxu0 0.0
        %323 = vmatpush1.msra.mxu0 0.0
        %324 = vmatprep.subr.mxu0 0.0
        %325 = vmatpush1.msra.mxu0 0.0
        %326 = vmatprep.subr.mxu0 0.0
        %327 = vmatpush1.msra.mxu0 0.0
        %328 = vmatprep.subr.mxu0 0.0
        %329 = vmatpush1.msra.mxu0 0.0
        %330 = vmatprep.subr.mxu0 0.0
        %331 = vmatpush1.msra.mxu0 0.0
        %332 = vmatprep.subr.mxu0 0.0
        %333 = vmatpush1.msra.mxu0 0.0
        %334 = vmatprep.subr.mxu0 0.0
        %335 = vmatpush1.msra.mxu0 0.0
        %336 = vmatprep.subr.mxu0 0.0
        %337 = vmatpush1.msra.mxu0 0.0
        %338 = vmatprep.subr.mxu0 0.0
        %339 = vmatpush1.msra.mxu0 0.0
        %340 = vmatprep.subr.mxu0 0.0
        %341 = vmatpush1.msra.mxu0 0.0
        %342 = vmatprep.subr.mxu0 0.0
        %343 = vmatpush1.msra.mxu0 0.0
        %344 = vmatprep.subr.mxu0 0.0
        %345 = vmatpush1.msra.mxu0 0.0
        %346 = vmatprep.subr.mxu0 0.0
        %347 = vmatpush1.msra.mxu0 0.0
        %348 = vmatprep.subr.mxu0 0.0
        %349 = vmatpush1.msra.mxu0 0.0
        %350 = vmatprep.subr.mxu0 0.0
        %351 = vmatpush1.msra.mxu0 0.0
        %352 = vmatprep.subr.mxu0 0.0
        %353 = vmatpush1.msra.mxu0 0.0
        %354 = vmatprep.subr.mxu0 0.0
        %355 = vmatpush1.msra.mxu0 0.0
        %356 = vmatprep.subr.mxu0 0.0
        %357 = vmatpush1.msra.mxu0 0.0
        %358 = vmatprep.subr.mxu0 0.0
        %359 = vmatpush1.msra.mxu0 0.0
        %360 = vmatprep.subr.mxu0 0.0
        %361 = vmatpush1.msra.mxu0 0.0
        %362 = vmatprep.subr.mxu0 0.0
        %363 = vmatpush1.msra.mxu0 0.0
        %364 = vmatprep.subr.mxu0 0.0
        %365 = vmatpush1.msra.mxu0 0.0
        %366 = vmatprep.subr.mxu0 0.0
        %367 = vmatpush1.msra.mxu0 0.0
        %368 = vmatprep.mubr.f32.mxu0 0.0
        %369 = vmatmul.mubr.f32.gmra.mrb[0].mxu0 %v299
        %v370 = vpop.f32.mrb[0].mxu0
        %v371 = vadd.f32 %v295, %v370
        %v372 = vpop.f32.mrb[0].mxu0
        %373 = vdwg.mxu0
        %v375 = vsel %vm221, %v220, 0
        %v378 = vsel %vm225, %v215, 0
        %380 = vmatprep.subr.mxu0 0.0
        %381 = vmatpush1.msra.mxu0 %v378
        %382 = vmatprep.subr.mxu0 0.0
        %383 = vmatpush1.msra.mxu0 0.0
        %384 = vmatprep.subr.mxu0 0.0
        %385 = vmatpush1.msra.mxu0 0.0
        %386 = vmatprep.subr.mxu0 0.0
        %387 = vmatpush1.msra.mxu0 0.0
        %388 = vmatprep.subr.mxu0 0.0
        %389 = vmatpush1.msra.mxu0 0.0
        %390 = vmatprep.subr.mxu0 0.0
        %391 = vmatpush1.msra.mxu0 0.0
        %392 = vmatprep.subr.mxu0 0.0
        %393 = vmatpush1.msra.mxu0 0.0
        %394 = vmatprep.subr.mxu0 0.0
        %395 = vmatpush1.msra.mxu0 0.0
        %396 = vmatprep.subr.mxu0 0.0
        %397 = vmatpush1.msra.mxu0 0.0
        %398 = vmatprep.subr.mxu0 0.0
        %399 = vmatpush1.msra.mxu0 0.0
        %400 = vmatprep.subr.mxu0 0.0
        %401 = vmatpush1.msra.mxu0 0.0
        %402 = vmatprep.subr.mxu0 0.0
        %403 = vmatpush1.msra.mxu0 0.0
        %404 = vmatprep.subr.mxu0 0.0
        %405 = vmatpush1.msra.mxu0 0.0
        %406 = vmatprep.subr.mxu0 0.0
        %407 = vmatpush1.msra.mxu0 0.0
        %408 = vmatprep.subr.mxu0 0.0
        %409 = vmatpush1.msra.mxu0 0.0
        %410 = vmatprep.subr.mxu0 0.0
        %411 = vmatpush1.msra.mxu0 0.0
        %412 = vmatprep.subr.mxu0 0.0
        %413 = vmatpush1.msra.mxu0 0.0
        %414 = vmatprep.subr.mxu0 0.0
        %415 = vmatpush1.msra.mxu0 0.0
        %416 = vmatprep.subr.mxu0 0.0
        %417 = vmatpush1.msra.mxu0 0.0
        %418 = vmatprep.subr.mxu0 0.0
        %419 = vmatpush1.msra.mxu0 0.0
        %420 = vmatprep.subr.mxu0 0.0
        %421 = vmatpush1.msra.mxu0 0.0
        %422 = vmatprep.subr.mxu0 0.0
        %423 = vmatpush1.msra.mxu0 0.0
        %424 = vmatprep.subr.mxu0 0.0
        %425 = vmatpush1.msra.mxu0 0.0
        %426 = vmatprep.subr.mxu0 0.0
        %427 = vmatpush1.msra.mxu0 0.0
        %428 = vmatprep.subr.mxu0 0.0
        %429 = vmatpush1.msra.mxu0 0.0
        %430 = vmatprep.subr.mxu0 0.0
        %431 = vmatpush1.msra.mxu0 0.0
        %432 = vmatprep.subr.mxu0 0.0
        %433 = vmatpush1.msra.mxu0 0.0
        %434 = vmatprep.subr.mxu0 0.0
        %435 = vmatpush1.msra.mxu0 0.0
        %436 = vmatprep.subr.mxu0 0.0
        %437 = vmatpush1.msra.mxu0 0.0
        %438 = vmatprep.subr.mxu0 0.0
        %439 = vmatpush1.msra.mxu0 0.0
        %440 = vmatprep.subr.mxu0 0.0
        %441 = vmatpush1.msra.mxu0 0.0
        %442 = vmatprep.subr.mxu0 0.0
        %443 = vmatpush1.msra.mxu0 0.0
        %444 = vmatprep.mubr.f32.mxu0 0.0
        %445 = vmatmul.mubr.f32.gmra.mrb[0].mxu0 %v375
        %v446 = vpop.f32.mrb[0].mxu0
        %v447 = vadd.f32 0.0, %v446
        %v448 = vpop.f32.mrb[0].mxu0
        %449 = vdwg.mxu0
        %v450 = vadd.f32 %v371, %v447
        %v451 = vld [vmem:[%s2] sm:$0xff]
        %453 = vset.pattern.permute.xlu0 0
        %454 = vperm.xlu0 %453, %v451
        %v455 = vpop.permute.xlu0 %454
        %v457 = vadd.f32 %v450, %v455
        %vm458 = vcmask 130048
        %459 = vst.msk [vmem:[%s189] sm:$0xff] %vm458, %v457
        %v460 = vsel %vm458, %v457, 0.0
        %461 = vadd.xlane.f32.xlu0 %v460
        %v462 = vpop.xlane.xlu0 %461
        %463 = vst.msk [vmem:[%s203] sm:$0xff] %vm209, %v462
        %v464 = vmul.f32 %v457, %v457
        %v465 = vsel %vm458, %v464, 0.0
        %466 = vadd.xlane.f32.xlu0 %v465
        %v467 = vpop.xlane.xlu0 %466
        %vm468 = vcmask 15368
        %469 = vst.msk [vmem:[%s203] sm:$0xff] %vm468, %v467
        %s470 = sand.u32 %s95, 1
        %s471 = scalar_lea.sflag [#allocation3], %s470
        %s472 = sand.u32 %s95, 1
        %s473 = smul.addr %s472, 8
        %s474 = scalar_lea.vmem [#allocation2], %s473
        %p475 = scmp.lt.s32.totalorder %s19, 1
        %s476 = scalar_select %p475, %s19, 1
        %s477 = smul.addr %s476, 8
        %s478 = scalar_lea.vmem %s4, %s477
        // Predicated region
        $region33: #{_down_forward.2} parent=31 // pred_check
          %p479 = pneg %p105
        $region34: #{_down_forward.2} parent=31 // pred_check_branch
          %481 = sbr.rel (%p479) target = $region36
        $region35: #{_down_forward.2} parent=31 // pred_region
          %s483 = ssub.s32 128, 128
          %484 = vsyncadd %s471, %s483
          %s485 = smul.addr %s19, 128
          %s486 = scalar_lea.hbm %s3, %s485
          %s488 = sshll.u32 %s474, 4
          %s489 = int_to_ptr.vmem [resolvable:$true] %s488
          %491 = dma.vmem_to_hbm [thread:$0]  %s489, 128, %s486, %s471
        $region36: #{_down_forward.2} parent=31 // pred_fallthru
          _
        // Predicated region
        $region37: #{_down_forward.2} parent=31 // pred_check
          %p492 = pneg %p131
        $region38: #{_down_forward.2} parent=31 // pred_check_branch
          %494 = sbr.rel (%p492) target = $region40
        $region39: #{_down_forward.2} parent=31 // pred_region
          _
        $region40: #{_down_forward.2} parent=31 // pred_fallthru
          _
      $region32: #{_down_forward.2} parent=5 // pred_fallthru
        _
      %p495 = scmp.le.s32.totalorder 2, %s14
      // Predicated region
      $region41: #{_down_forward.2} parent=5 // pred_check
        %p496 = pneg %p495
      $region42: #{_down_forward.2} parent=5 // pred_check_branch
        %498 = sbr.rel (%p496) target = $region44
      $region43: #{_down_forward.2} parent=5 // pred_region
        %s499 = ssub.s32 %s14, 2
        // Predicated region
        $region45: #{_down_forward.2} parent=43 // pred_check
          %p500 = pneg %p111
        $region46: #{_down_forward.2} parent=43 // pred_check_branch
          %502 = sbr.rel (%p500) target = $region48
        $region47: #{_down_forward.2} parent=43 // pred_region
          %s503 = sand.u32 %s96, 1
          %s504 = scalar_lea.sflag [#allocation3], %s503
          %s505 = sand.u32 %s96, 1
          %s506 = smul.addr %s505, 8
          %s507 = scalar_lea.vmem [#allocation2], %s506
          %508 = dma.done %s504, 128
        $region48: #{_down_forward.2} parent=43 // pred_fallthru
          _
        // Predicated region
        $region49: #{_down_forward.2} parent=43 // pred_check
          %p509 = pneg %p137
        $region50: #{_down_forward.2} parent=43 // pred_check_branch
          %511 = sbr.rel (%p509) target = $region52
        $region51: #{_down_forward.2} parent=43 // pred_region
          %p512 = scmp.lt.s32.totalorder %s20, 1
          %s513 = scalar_select %p512, %s20, 1
          %s514 = smul.addr %s513, 8
          %s515 = scalar_lea.vmem %s4, %s514
        $region52: #{_down_forward.2} parent=43 // pred_fallthru
          _
      $region44: #{_down_forward.2} parent=5 // pred_fallthru
        _
    $region6: #{_down_forward.2} parent=1 // loop_footer
      %s18 = sadd.s32 1, %s14
    $region7: #{_down_forward.2} parent=1 // loop_footer_branch
      %13 = sbr.rel target = $region3
    $region8: #{_down_forward.2} parent=1 // loop_exit
      _
    %516 = vsyncpa [#allocation3], 1
    %s517 = scalar_lea.sflag [#allocation3], 1
    %518 = vsyncpa %s517, 1

</llo_original>
